<compile_context>
chip_gen: v7x
topology: tpu7x:2x2x1
jax: 0.10.0
libtpu: 0.0.40
codegen_flags: <defaults>
</compile_context>

<pallas_src>
import jax
import jax.numpy as jnp
from jax.experimental import pallas as pl
from jax.experimental.pallas import tpu as pltpu

CROSS_LAYER_NUM = 3
DNN_HIDDEN = [128, 64]
EMBEDDING_SIZE = 32


def dcn_kernel(x0_ref, cw_ref, cb0_ref, w0_ref, b0_ref, w1_ref, b1_ref,
               fcwc_ref, fcwd_ref, fcb_ref, out_ref):
    x0 = x0_ref[...]                                             # (BT, D)

    # Cross network.  NOTE: the reference PyTorch module always adds
    # cross_b[0] (not cross_b[i]) — reproduced exactly.  The loop-invariant
    # (x0 + b) is hoisted out of the loop.
    x0_plus_b = x0 + cb0_ref[...]                                # (BT, D)
    cross = x0
    for i in range(CROSS_LAYER_NUM):
        w_i = cw_ref[i:i + 1, :]                                 # (1, D)
        logit = jnp.sum(cross * w_i, axis=-1, keepdims=True)     # (BT, 1)
        cross = logit * x0 + x0_plus_b

    # Deep network: two Linear + ReLU layers on the MXU (f32 accumulate).
    h = jnp.maximum(
        jnp.dot(x0, w0_ref[...], preferred_element_type=jnp.float32) + b0_ref[...],
        0.0)
    h = jnp.maximum(
        jnp.dot(h, w1_ref[...], preferred_element_type=jnp.float32) + b1_ref[...],
        0.0)

    # Final FC over concat([cross, dnn]) as split VPU-mul + lane reductions
    # (avoids two full-latency N=1 MXU passes).
    logits = (jnp.sum(cross * fcwc_ref[...], axis=-1, keepdims=True)
              + jnp.sum(h * fcwd_ref[...], axis=-1, keepdims=True)
              + fcb_ref[0, 0])
    out_ref[...] = jax.nn.sigmoid(logits)


def dcn_forward(params, idxs, vals, *, batch_tile=1024):
    # TODO(synk): fuse the embedding gather into the kernel (fm_emb in
    # memory_space=pl.ANY + scalar-prefetched idxs + DMA row gather) to avoid
    # materializing the gathered (B, D) activations in HBM first.
    emb = params["fm_emb"][idxs]                                 # (B, F, E) gather — glue
    B, F, E = emb.shape
    D = F * E
    x0 = (emb * vals[:, :, None]).reshape(B, D).astype(jnp.float32)

    # Batch tile: multiple of 8 (sublane), capped so BT*D*4 stays ~1 MiB.
    BT = max(8, (min(B, batch_tile) // 8) * 8)
    num_tiles = pl.cdiv(B, BT)
    B_pad = num_tiles * BT
    if B_pad != B:
        x0 = jnp.pad(x0, ((0, B_pad - B), (0, 0)))

    H0, H1 = DNN_HIDDEN

    def resident(shape):
        # Weights/biases: same block every grid step -> stay resident in VMEM.
        return pl.BlockSpec(shape, lambda i: (0, 0))

    out = pl.pallas_call(
        dcn_kernel,
        out_shape=jax.ShapeDtypeStruct((B_pad, 1), jnp.float32),
        grid_spec=pltpu.PrefetchScalarGridSpec(
            num_scalar_prefetch=0,
            grid=(num_tiles,),
            in_specs=[
                pl.BlockSpec((BT, D), lambda i: (i, 0)),            # x0 (streamed)
                resident((CROSS_LAYER_NUM, D)),                     # cross_w rows
                resident((1, D)),                                   # cross_b[0]
                resident((D, H0)), resident((1, H0)),               # dnn layer 0
                resident((H0, H1)), resident((1, H1)),              # dnn layer 1
                resident((1, D)), resident((1, H1)),                # fc split weights
                pl.BlockSpec(memory_space=pltpu.MemorySpace.SMEM),  # fc bias scalar
            ],
            out_specs=pl.BlockSpec((BT, 1), lambda i: (i, 0)),
        ),
        compiler_params=pltpu.CompilerParams(
            dimension_semantics=("parallel",)),
    )(x0,
      params["cross_w"], params["cross_b"][0:1],
      params["dnn0_w"], params["dnn0_b"],
      params["dnn1_w"], params["dnn1_b"],
      params["fc_w_cross"], params["fc_w_dnn"], params["fc_b"])
    return out[:B]


def dcn_ref(params, idxs, vals):
    """Pure-JAX reference mirroring the PyTorch forward (for verification)."""
    emb = params["fm_emb"][idxs] * vals[:, :, None]
    x0 = emb.reshape(emb.shape[0], -1)
    cross = x0
    for i in range(CROSS_LAYER_NUM):
        logit = cross @ params["cross_w"][i]                      # (B,)
        cross = logit[:, None] * x0 + params["cross_b"][0][None, :] + x0
    dnn = x0
    dnn = jax.nn.relu(dnn @ params["dnn0_w"] + params["dnn0_b"])
    dnn = jax.nn.relu(dnn @ params["dnn1_w"] + params["dnn1_b"])
    logits = (cross @ params["fc_w_cross"].T
              + dnn @ params["fc_w_dnn"].T
              + params["fc_b"])
    return jax.nn.sigmoid(logits)


def init_params(key, feature_size, field_size, embedding_size):
    D = field_size * embedding_size
    ks = jax.random.split(key, 9)
    f32 = jnp.float32
    fan_fc = D + DNN_HIDDEN[1]
    return {
        # torch.nn.Embedding(feature_size, embedding_size)
        "fm_emb": jax.random.normal(ks[0], (feature_size, embedding_size), f32),
        # cross_w[i]: Linear(D, 1, bias=False) -> stored as (L, D) row vectors
        "cross_w": jax.random.normal(ks[1], (CROSS_LAYER_NUM, D), f32) / jnp.sqrt(D),
        # cross_b[i]: Parameter(zeros(D)) — non-zero init so the +b[0] path is exercised
        "cross_b": jax.random.normal(ks[2], (CROSS_LAYER_NUM, D), f32) * 0.01,
        # dnn_layer[0]: Linear(D, 128) — stored transposed (in, out)
        "dnn0_w": jax.random.normal(ks[3], (D, DNN_HIDDEN[0]), f32) / jnp.sqrt(D),
        "dnn0_b": jax.random.normal(ks[4], (1, DNN_HIDDEN[0]), f32) * 0.01,
        # dnn_layer[1]: Linear(128, 64)
        "dnn1_w": jax.random.normal(ks[5], (DNN_HIDDEN[0], DNN_HIDDEN[1]), f32)
                  / jnp.sqrt(DNN_HIDDEN[0]),
        "dnn1_b": jax.random.normal(ks[6], (1, DNN_HIDDEN[1]), f32) * 0.01,
        # fc: Linear(D + 64, 1) — split & stored as row vectors (1, D) / (1, 64)
        "fc_w_cross": jax.random.normal(ks[7], (1, D), f32) / jnp.sqrt(fan_fc),
        "fc_w_dnn": jax.random.normal(ks[8], (1, DNN_HIDDEN[1]), f32) / jnp.sqrt(fan_fc),
        "fc_b": jnp.zeros((1, 1), f32),
    }


if __name__ == "__main__":
    key = jax.random.PRNGKey(0)
    feature_size, field_size, batch = 100, 8, 8

    k_params, k_idx, k_val = jax.random.split(key, 3)
    params = init_params(k_params, feature_size, field_size, EMBEDDING_SIZE)
    idxs = jax.random.randint(k_idx, (batch, field_size), 0, feature_size, dtype=jnp.int32)
    vals = jax.random.uniform(k_val, (batch, field_size), dtype=jnp.float32)

    out = jax.block_until_ready(dcn_forward(params, idxs, vals))
    ref = dcn_ref(params, idxs, vals)

    assert out.shape == (batch, 1), out.shape
    assert jnp.allclose(out, ref, atol=1e-3, rtol=1e-3), (out, ref)
    print("KERNEL_OK")
</pallas_src>

<mosaic_0001>
module attributes {stable_mosaic.version = 11 : i64} {
  func.func @dcn_kernel(%arg0: i32, %arg1: memref<8x256xf32, #tpu.memory_space<vmem>>, %arg2: memref<3x256xf32, #tpu.memory_space<vmem>>, %arg3: memref<1x256xf32, #tpu.memory_space<vmem>>, %arg4: memref<256x128xf32, #tpu.memory_space<vmem>>, %arg5: memref<1x128xf32, #tpu.memory_space<vmem>>, %arg6: memref<128x64xf32, #tpu.memory_space<vmem>>, %arg7: memref<1x64xf32, #tpu.memory_space<vmem>>, %arg8: memref<1x256xf32, #tpu.memory_space<vmem>>, %arg9: memref<1x64xf32, #tpu.memory_space<vmem>>, %arg10: memref<1x1xf32, #tpu.memory_space<smem>>, %arg11: memref<8x1xf32, #tpu.memory_space<vmem>>) attributes {dimension_semantics = [#tpu.dimension_semantics<parallel>], iteration_bounds = array<i64: 1>, scalar_prefetch = 0 : i64, scratch_operands = 0 : i64, tpu.core_type = #tpu.core_type<tc>, window_params = [{transform_indices = @transform_0, window_bounds = array<i64: 8, 256>}, {pipeline_mode = #tpu.pipeline_mode<synchronous>, transform_indices = @transform_1, window_bounds = array<i64: 3, 256>}, {pipeline_mode = #tpu.pipeline_mode<synchronous>, transform_indices = @transform_2, window_bounds = array<i64: 1, 256>}, {pipeline_mode = #tpu.pipeline_mode<synchronous>, transform_indices = @transform_3, window_bounds = array<i64: 256, 128>}, {pipeline_mode = #tpu.pipeline_mode<synchronous>, transform_indices = @transform_4, window_bounds = array<i64: 1, 128>}, {pipeline_mode = #tpu.pipeline_mode<synchronous>, transform_indices = @transform_5, window_bounds = array<i64: 128, 64>}, {pipeline_mode = #tpu.pipeline_mode<synchronous>, transform_indices = @transform_6, window_bounds = array<i64: 1, 64>}, {pipeline_mode = #tpu.pipeline_mode<synchronous>, transform_indices = @transform_7, window_bounds = array<i64: 1, 256>}, {pipeline_mode = #tpu.pipeline_mode<synchronous>, transform_indices = @transform_8, window_bounds = array<i64: 1, 64>}, {transform_indices = @transform_9, window_bounds = array<i64: 1, 1>}, {transform_indices = @transform_10, window_bounds = array<i64: 8, 1>}]} {
    %c0 = arith.constant 0 : index
    %c0_0 = arith.constant 0 : index
    %0 = vector.load %arg1[%c0, %c0_0] : memref<8x256xf32, #tpu.memory_space<vmem>>, vector<8x256xf32>
    %c0_1 = arith.constant 0 : index
    %c0_2 = arith.constant 0 : index
    %1 = vector.load %arg3[%c0_1, %c0_2] : memref<1x256xf32, #tpu.memory_space<vmem>>, vector<1x256xf32>
    %2 = vector.broadcast %1 : vector<1x256xf32> to vector<8x256xf32>
    %3 = arith.addf %0, %2 : vector<8x256xf32>
    %c0_3 = arith.constant 0 : index
    %c0_4 = arith.constant 0 : index
    %4 = vector.load %arg2[%c0_3, %c0_4] : memref<3x256xf32, #tpu.memory_space<vmem>>, vector<1x256xf32>
    %5 = vector.broadcast %4 : vector<1x256xf32> to vector<8x256xf32>
    %6 = arith.mulf %0, %5 : vector<8x256xf32>
    %cst = arith.constant dense<0.000000e+00> : vector<8xf32>
    %7 = vector.multi_reduction <add>, %6, %cst [1] : vector<8x256xf32> to vector<8xf32>
    %8 = vector.shape_cast %7 : vector<8xf32> to vector<8x1xf32>
    %9 = vector.broadcast %8 : vector<8x1xf32> to vector<8x256xf32>
    %10 = arith.mulf %9, %0 : vector<8x256xf32>
    %11 = arith.addf %10, %3 : vector<8x256xf32>
    %c1 = arith.constant 1 : index
    %c0_5 = arith.constant 0 : index
    %12 = vector.load %arg2[%c1, %c0_5] : memref<3x256xf32, #tpu.memory_space<vmem>>, vector<1x256xf32>
    %13 = vector.broadcast %12 : vector<1x256xf32> to vector<8x256xf32>
    %14 = arith.mulf %11, %13 : vector<8x256xf32>
    %cst_6 = arith.constant dense<0.000000e+00> : vector<8xf32>
    %15 = vector.multi_reduction <add>, %14, %cst_6 [1] : vector<8x256xf32> to vector<8xf32>
    %16 = vector.shape_cast %15 : vector<8xf32> to vector<8x1xf32>
    %17 = vector.broadcast %16 : vector<8x1xf32> to vector<8x256xf32>
    %18 = arith.mulf %17, %0 : vector<8x256xf32>
    %19 = arith.addf %18, %3 : vector<8x256xf32>
    %c2 = arith.constant 2 : index
    %c0_7 = arith.constant 0 : index
    %20 = vector.load %arg2[%c2, %c0_7] : memref<3x256xf32, #tpu.memory_space<vmem>>, vector<1x256xf32>
    %21 = vector.broadcast %20 : vector<1x256xf32> to vector<8x256xf32>
    %22 = arith.mulf %19, %21 : vector<8x256xf32>
    %cst_8 = arith.constant dense<0.000000e+00> : vector<8xf32>
    %23 = vector.multi_reduction <add>, %22, %cst_8 [1] : vector<8x256xf32> to vector<8xf32>
    %24 = vector.shape_cast %23 : vector<8xf32> to vector<8x1xf32>
    %25 = vector.broadcast %24 : vector<8x1xf32> to vector<8x256xf32>
    %26 = arith.mulf %25, %0 : vector<8x256xf32>
    %27 = arith.addf %26, %3 : vector<8x256xf32>
    %c0_9 = arith.constant 0 : index
    %c0_10 = arith.constant 0 : index
    %28 = vector.load %arg4[%c0_9, %c0_10] : memref<256x128xf32, #tpu.memory_space<vmem>>, vector<256x128xf32>
    %cst_11 = arith.constant dense<0.000000e+00> : vector<8x128xf32>
    %29 = tpu.matmul %0, %28, %cst_11 {dimension_numbers = #tpu.dot_dimension_numbers<[1], [0], [0], [1], [0, 0, 1, 1], [], []>} : vector<8x256xf32>, vector<256x128xf32>, vector<8x128xf32> -> vector<8x128xf32>
    %c0_12 = arith.constant 0 : index
    %c0_13 = arith.constant 0 : index
    %30 = vector.load %arg5[%c0_12, %c0_13] : memref<1x128xf32, #tpu.memory_space<vmem>>, vector<1x128xf32>
    %31 = vector.broadcast %30 : vector<1x128xf32> to vector<8x128xf32>
    %32 = arith.addf %29, %31 : vector<8x128xf32>
    %cst_14 = arith.constant 0.000000e+00 : f32
    %33 = vector.broadcast %cst_14 : f32 to vector<8x128xf32>
    %34 = arith.maximumf %32, %33 : vector<8x128xf32>
    %c0_15 = arith.constant 0 : index
    %c0_16 = arith.constant 0 : index
    %35 = vector.load %arg6[%c0_15, %c0_16] : memref<128x64xf32, #tpu.memory_space<vmem>>, vector<128x64xf32>
    %cst_17 = arith.constant dense<0.000000e+00> : vector<8x64xf32>
    %36 = tpu.matmul %34, %35, %cst_17 {dimension_numbers = #tpu.dot_dimension_numbers<[1], [0], [0], [1], [0, 0, 1, 1], [], []>} : vector<8x128xf32>, vector<128x64xf32>, vector<8x64xf32> -> vector<8x64xf32>
    %c0_18 = arith.constant 0 : index
    %c0_19 = arith.constant 0 : index
    %37 = vector.load %arg7[%c0_18, %c0_19] : memref<1x64xf32, #tpu.memory_space<vmem>>, vector<1x64xf32>
    %38 = vector.broadcast %37 : vector<1x64xf32> to vector<8x64xf32>
    %39 = arith.addf %36, %38 : vector<8x64xf32>
    %cst_20 = arith.constant 0.000000e+00 : f32
    %40 = vector.broadcast %cst_20 : f32 to vector<8x64xf32>
    %41 = arith.maximumf %39, %40 : vector<8x64xf32>
    %c0_21 = arith.constant 0 : index
    %c0_22 = arith.constant 0 : index
    %42 = vector.load %arg8[%c0_21, %c0_22] : memref<1x256xf32, #tpu.memory_space<vmem>>, vector<1x256xf32>
    %43 = vector.broadcast %42 : vector<1x256xf32> to vector<8x256xf32>
    %44 = arith.mulf %27, %43 : vector<8x256xf32>
    %cst_23 = arith.constant dense<0.000000e+00> : vector<8xf32>
    %45 = vector.multi_reduction <add>, %44, %cst_23 [1] : vector<8x256xf32> to vector<8xf32>
    %46 = vector.shape_cast %45 : vector<8xf32> to vector<8x1xf32>
    %c0_24 = arith.constant 0 : index
    %c0_25 = arith.constant 0 : index
    %47 = vector.load %arg9[%c0_24, %c0_25] : memref<1x64xf32, #tpu.memory_space<vmem>>, vector<1x64xf32>
    %48 = vector.broadcast %47 : vector<1x64xf32> to vector<8x64xf32>
    %49 = arith.mulf %41, %48 : vector<8x64xf32>
    %cst_26 = arith.constant dense<0.000000e+00> : vector<8xf32>
    %50 = vector.multi_reduction <add>, %49, %cst_26 [1] : vector<8x64xf32> to vector<8xf32>
    %51 = vector.shape_cast %50 : vector<8xf32> to vector<8x1xf32>
    %52 = arith.addf %46, %51 : vector<8x1xf32>
    %c0_27 = arith.constant 0 : index
    %c0_28 = arith.constant 0 : index
    %53 = memref.load %arg10[%c0_27, %c0_28] : memref<1x1xf32, #tpu.memory_space<smem>>
    %54 = vector.broadcast %53 : f32 to vector<8x1xf32>
    %55 = arith.addf %52, %54 : vector<8x1xf32>
    %56 = arith.negf %55 : vector<8x1xf32>
    %57 = math.exp %56 : vector<8x1xf32>
    %cst_29 = arith.constant 1.000000e+00 : f32
    %58 = vector.broadcast %cst_29 : f32 to vector<8x1xf32>
    %59 = arith.addf %58, %57 : vector<8x1xf32>
    %60 = arith.divf %58, %59 : vector<8x1xf32>
    %c0_30 = arith.constant 0 : index
    %c0_31 = arith.constant 0 : index
    %61 = vector.load %arg11[%c0_30, %c0_31] : memref<8x1xf32, #tpu.memory_space<vmem>>, vector<8x1xf32>
    tpu.vector_store %arg11[%c0_30, %c0_31], %60 {strides = array<i32>} : memref<8x1xf32, #tpu.memory_space<vmem>>, vector<8x1xf32>,
    return
  }
  func.func @transform_0(%arg0: i32) -> (i32, i32) {
    %c0_i32 = arith.constant 0 : i32
    %c0_i32_0 = arith.constant 0 : i32
    return %arg0, %c0_i32 : i32, i32
  }
  func.func @transform_1(%arg0: i32) -> (i32, i32) {
    %c0_i32 = arith.constant 0 : i32
    %c0_i32_0 = arith.constant 0 : i32
    %c0_i32_1 = arith.constant 0 : i32
    return %c0_i32, %c0_i32_0 : i32, i32
  }
  func.func @transform_2(%arg0: i32) -> (i32, i32) {
    %c0_i32 = arith.constant 0 : i32
    %c0_i32_0 = arith.constant 0 : i32
    %c0_i32_1 = arith.constant 0 : i32
    return %c0_i32, %c0_i32_0 : i32, i32
  }
  func.func @transform_3(%arg0: i32) -> (i32, i32) {
    %c0_i32 = arith.constant 0 : i32
    %c0_i32_0 = arith.constant 0 : i32
    %c0_i32_1 = arith.constant 0 : i32
    return %c0_i32, %c0_i32_0 : i32, i32
  }
  func.func @transform_4(%arg0: i32) -> (i32, i32) {
    %c0_i32 = arith.constant 0 : i32
    %c0_i32_0 = arith.constant 0 : i32
    %c0_i32_1 = arith.constant 0 : i32
    return %c0_i32, %c0_i32_0 : i32, i32
  }
  func.func @transform_5(%arg0: i32) -> (i32, i32) {
    %c0_i32 = arith.constant 0 : i32
    %c0_i32_0 = arith.constant 0 : i32
    %c0_i32_1 = arith.constant 0 : i32
    return %c0_i32, %c0_i32_0 : i32, i32
  }
  func.func @transform_6(%arg0: i32) -> (i32, i32) {
    %c0_i32 = arith.constant 0 : i32
    %c0_i32_0 = arith.constant 0 : i32
    %c0_i32_1 = arith.constant 0 : i32
    return %c0_i32, %c0_i32_0 : i32, i32
  }
  func.func @transform_7(%arg0: i32) -> (i32, i32) {
    %c0_i32 = arith.constant 0 : i32
    %c0_i32_0 = arith.constant 0 : i32
    %c0_i32_1 = arith.constant 0 : i32
    return %c0_i32, %c0_i32_0 : i32, i32
  }
  func.func @transform_8(%arg0: i32) -> (i32, i32) {
    %c0_i32 = arith.constant 0 : i32
    %c0_i32_0 = arith.constant 0 : i32
    %c0_i32_1 = arith.constant 0 : i32
    return %c0_i32, %c0_i32_0 : i32, i32
  }
  func.func @transform_9(%arg0: i32) -> (i32, i32) {
    %c0_i32 = arith.constant 0 : i32
    %c0_i32_0 = arith.constant 0 : i32
    %c0_i32_1 = arith.constant 0 : i32
    return %c0_i32, %c0_i32_0 : i32, i32
  }
  func.func @transform_10(%arg0: i32) -> (i32, i32) {
    %c0_i32 = arith.constant 0 : i32
    %c0_i32_0 = arith.constant 0 : i32
    return %arg0, %c0_i32 : i32, i32
  }
}

</mosaic_0001>

<llo_original>
// kernel: tpu_custom_call.1
$region0: #{tpu_custom_call.1}
  #allocation0 [shape = 'u32[]', space=smem, size = 0x4, offset = 0x4, fixed_abs, tag = 'smem constant byte address 0x4 - core index']
  #allocation1 [shape = 'u32[144,128]{1,0:T(1,128)}', space=vmem, size = 0x12000, scoped, tag = 'internal scratch']
  #allocation2 [shape = 'f32[1,1]{1,0:T(1,128)S(6)}', space=smem, size = 0x200, scoped, tag = 'scoped memory for tpu_custom_call.1']
  %s0 = inlined_call_operand.vmem [shape: f32[8,256], index: 0, kind: input, shape index: {}]
  %s1 = inlined_call_operand.vmem [shape: f32[3,256], index: 1, kind: input, shape index: {}]
  %s2 = inlined_call_operand.vmem [shape: f32[1,256], index: 2, kind: input, shape index: {}]
  %s3 = inlined_call_operand.hbm [shape: f32[256,128], index: 3, kind: input, shape index: {}]
  %s4 = inlined_call_operand.vmem [shape: f32[1,128], index: 4, kind: input, shape index: {}]
  %s5 = inlined_call_operand.vmem [shape: f32[128,64], index: 5, kind: input, shape index: {}]
  %s6 = inlined_call_operand.vmem [shape: f32[1,64], index: 6, kind: input, shape index: {}]
  %s7 = inlined_call_operand.vmem [shape: f32[1,256], index: 7, kind: input, shape index: {}]
  %s8 = inlined_call_operand.vmem [shape: f32[1,64], index: 8, kind: input, shape index: {}]
  %s9 = inlined_call_operand.<no memory space> [shape: f32[1,1], index: 9, kind: input, shape index: {}]
  %s10 = inlined_call_operand.vmem [shape: f32[8,1], index: 10, kind: output, shape index: {}]
  %s11 = sld [smem:[#allocation0]]
  $region54: #{tpu_custom_call.1} parent=0
    _
  %s13 = ssub.s32 1, %s11
  %s14 = scalar_select 0, %s13, %s11
  %15 = sst [smem:[#allocation2]] %s9
  $region1: #{tpu_custom_call.1} parent=0
    #allocation3 [shape = 'u8[131072]{0}', space=vmem, size = 0x20000, scoped, tag = 'input window, operand 3, single buffered']
    #allocation4 [shape = 's32[1]{0}', space=sflag, size = 0x4, scoped, tag = 'scoped memory for tpu_custom_call.1']
    %16 = vsyncpa [#allocation4], 0
    // Predicated region
    $region2: #{tpu_custom_call.1} parent=1 // pred_check
      _
    $region3: #{tpu_custom_call.1} parent=1 // pred_check_branch
      %18 = sbr.rel (0) target = $region5
    $region4: #{tpu_custom_call.1} parent=1 // pred_region
      _
    $region5: #{tpu_custom_call.1} parent=1 // pred_fallthru
      _
    // Predicated region
    $region6: #{tpu_custom_call.1} parent=1 // pred_check
      _
    $region7: #{tpu_custom_call.1} parent=1 // pred_check_branch
      %20 = sbr.rel (0) target = $region9
    $region8: #{tpu_custom_call.1} parent=1 // pred_region
      _
    $region9: #{tpu_custom_call.1} parent=1 // pred_fallthru
      _
    // Predicated region
    $region10: #{tpu_custom_call.1} parent=1 // pred_check
      _
    $region11: #{tpu_custom_call.1} parent=1 // pred_check_branch
      %22 = sbr.rel (0) target = $region13
    $region12: #{tpu_custom_call.1} parent=1 // pred_region
      _
    $region13: #{tpu_custom_call.1} parent=1 // pred_fallthru
      _
    // Predicated region
    $region14: #{tpu_custom_call.1} parent=1 // pred_check
      _
    $region15: #{tpu_custom_call.1} parent=1 // pred_check_branch
      %24 = sbr.rel (0) target = $region17
    $region16: #{tpu_custom_call.1} parent=1 // pred_region
      %s26 = ssub.s32 4096, 4096
      %27 = vsyncadd [#allocation4], %s26
      %s28 = sshll.u32 [#allocation3], 4
      %s29 = int_to_ptr.vmem [resolvable:$true] %s28
      %34 = dma.hbm_to_vmem [thread:$0]  %s3, 4096, %s29, [#allocation4], 128, 128, 8
    $region17: #{tpu_custom_call.1} parent=1 // pred_fallthru
      _
    // Predicated region
    $region18: #{tpu_custom_call.1} parent=1 // pred_check
      _
    $region19: #{tpu_custom_call.1} parent=1 // pred_check_branch
      %36 = sbr.rel (0) target = $region21
    $region20: #{tpu_custom_call.1} parent=1 // pred_region
      _
    $region21: #{tpu_custom_call.1} parent=1 // pred_fallthru
      _
    // Predicated region
    $region22: #{tpu_custom_call.1} parent=1 // pred_check
      _
    $region23: #{tpu_custom_call.1} parent=1 // pred_check_branch
      %38 = sbr.rel (0) target = $region25
    $region24: #{tpu_custom_call.1} parent=1 // pred_region
      _
    $region25: #{tpu_custom_call.1} parent=1 // pred_fallthru
      _
    // Predicated region
    $region26: #{tpu_custom_call.1} parent=1 // pred_check
      _
    $region27: #{tpu_custom_call.1} parent=1 // pred_check_branch
      %40 = sbr.rel (0) target = $region29
    $region28: #{tpu_custom_call.1} parent=1 // pred_region
      _
    $region29: #{tpu_custom_call.1} parent=1 // pred_fallthru
      _
    // Predicated region
    $region30: #{tpu_custom_call.1} parent=1 // pred_check
      _
    $region31: #{tpu_custom_call.1} parent=1 // pred_check_branch
      %42 = sbr.rel (0) target = $region33
    $region32: #{tpu_custom_call.1} parent=1 // pred_region
      _
    $region33: #{tpu_custom_call.1} parent=1 // pred_fallthru
      _
    // Predicated region
    $region34: #{tpu_custom_call.1} parent=1 // pred_check
      _
    $region35: #{tpu_custom_call.1} parent=1 // pred_check_branch
      %44 = sbr.rel (0) target = $region37
    $region36: #{tpu_custom_call.1} parent=1 // pred_region
      _
    $region37: #{tpu_custom_call.1} parent=1 // pred_fallthru
      _
    // Predicated region
    $region38: #{tpu_custom_call.1} parent=1 // pred_check
      _
    $region39: #{tpu_custom_call.1} parent=1 // pred_check_branch
      %46 = sbr.rel (0) target = $region41
    $region40: #{tpu_custom_call.1} parent=1 // pred_region
      _
    $region41: #{tpu_custom_call.1} parent=1 // pred_fallthru
      _
    // Predicated region
    $region42: #{tpu_custom_call.1} parent=1 // pred_check
      _
    $region43: #{tpu_custom_call.1} parent=1 // pred_check_branch
      %48 = sbr.rel (0) target = $region45
    $region44: #{tpu_custom_call.1} parent=1 // pred_region
      %49 = dma.done [#allocation4], 4096
    $region45: #{tpu_custom_call.1} parent=1 // pred_fallthru
      _
    %v50 = vld [vmem:[%s0] sm:$0xff]
    %v51 = vld [vmem:[%s0 + $0x8] sm:$0xff]
    %v52 = vld [vmem:[%s2] sm:$0x3]
    %v54 = vlaneseq
    %v55 = vshrl.u32 %v54, 7
    %v56 = vsub.s32 0, %v55
    %v57 = vrot.slane %v52, %v56
    %v58 = vlaneseq
    %v59 = vshrl.u32 %v58, 7
    %v60 = vsub.s32 1, %v59
    %v61 = vrot.slane %v52, %v60
    %v64 = vadd.f32 %v50, %v57
    %v65 = vadd.f32 %v51, %v61
    %v66 = vld [vmem:[%s1] ss:$4 sm:$0x3]
    %v68 = vlaneseq
    %v69 = vshrl.u32 %v68, 7
    %v70 = vsub.s32 0, %v69
    %v71 = vrot.slane %v66, %v70
    %v72 = vlaneseq
    %v73 = vshrl.u32 %v72, 7
    %v74 = vsub.s32 1, %v73
    %v75 = vrot.slane %v66, %v74
    %v78 = vmul.f32 %v50, %v71
    %v79 = vmul.f32 %v51, %v75
    %v80 = vadd.f32 %v78, %v79
    %81 = vadd.xlane.f32.xlu0 %v80
    %v82 = vpop.xlane.xlu0 %81
    %v83 = vmul.f32 %v82, %v50
    %v84 = vmul.f32 %v82, %v51
    %v85 = vadd.f32 %v83, %v64
    %v86 = vadd.f32 %v84, %v65
    %s87 = scalar_lea.vmem %s1, 1
    %v88 = vld [vmem:[%s87] ss:$4 sm:$0x3]
    %v90 = vlaneseq
    %v91 = vshrl.u32 %v90, 7
    %v92 = vsub.s32 0, %v91
    %v93 = vrot.slane %v88, %v92
    %v94 = vlaneseq
    %v95 = vshrl.u32 %v94, 7
    %v96 = vsub.s32 1, %v95
    %v97 = vrot.slane %v88, %v96
    %v100 = vmul.f32 %v85, %v93
    %v101 = vmul.f32 %v86, %v97
    %v102 = vadd.f32 %v100, %v101
    %103 = vadd.xlane.f32.xlu0 %v102
    %v104 = vpop.xlane.xlu0 %103
    %v105 = vmul.f32 %v104, %v50
    %v106 = vmul.f32 %v104, %v51
    %v107 = vadd.f32 %v105, %v64
    %v108 = vadd.f32 %v106, %v65
    %s109 = scalar_lea.vmem %s1, 2
    %v110 = vld [vmem:[%s109] ss:$4 sm:$0x3]
    %v112 = vlaneseq
    %v113 = vshrl.u32 %v112, 7
    %v114 = vsub.s32 0, %v113
    %v115 = vrot.slane %v110, %v114
    %v116 = vlaneseq
    %v117 = vshrl.u32 %v116, 7
    %v118 = vsub.s32 1, %v117
    %v119 = vrot.slane %v110, %v118
    %v122 = vmul.f32 %v107, %v115
    %v123 = vmul.f32 %v108, %v119
    %v124 = vadd.f32 %v122, %v123
    %125 = vadd.xlane.f32.xlu0 %v124
    %v126 = vpop.xlane.xlu0 %125
    %v127 = vmul.f32 %v126, %v50
    %v128 = vmul.f32 %v126, %v51
    %v129 = vadd.f32 %v127, %v64
    %v130 = vadd.f32 %v128, %v65
    %v131 = vld [vmem:[#allocation3] sm:$0xff]
    %v132 = vld [vmem:[#allocation3 + $0x8] sm:$0xff]
    %v133 = vld [vmem:[#allocation3 + $0x10] sm:$0xff]
    %v134 = vld [vmem:[#allocation3 + $0x18] sm:$0xff]
    %v135 = vld [vmem:[#allocation3 + $0x20] sm:$0xff]
    %v136 = vld [vmem:[#allocation3 + $0x28] sm:$0xff]
    %v137 = vld [vmem:[#allocation3 + $0x30] sm:$0xff]
    %v138 = vld [vmem:[#allocation3 + $0x38] sm:$0xff]
    %v139 = vld [vmem:[#allocation3 + $0x40] sm:$0xff]
    %v140 = vld [vmem:[#allocation3 + $0x48] sm:$0xff]
    %v141 = vld [vmem:[#allocation3 + $0x50] sm:$0xff]
    %v142 = vld [vmem:[#allocation3 + $0x58] sm:$0xff]
    %v143 = vld [vmem:[#allocation3 + $0x60] sm:$0xff]
    %v144 = vld [vmem:[#allocation3 + $0x68] sm:$0xff]
    %v145 = vld [vmem:[#allocation3 + $0x70] sm:$0xff]
    %v146 = vld [vmem:[#allocation3 + $0x78] sm:$0xff]
    %v147 = vld [vmem:[#allocation3 + $0x80] sm:$0xff]
    %v148 = vld [vmem:[#allocation3 + $0x88] sm:$0xff]
    %v149 = vld [vmem:[#allocation3 + $0x90] sm:$0xff]
    %v150 = vld [vmem:[#allocation3 + $0x98] sm:$0xff]
    %v151 = vld [vmem:[#allocation3 + $0xa0] sm:$0xff]
    %v152 = vld [vmem:[#allocation3 + $0xa8] sm:$0xff]
    %v153 = vld [vmem:[#allocation3 + $0xb0] sm:$0xff]
    %v154 = vld [vmem:[#allocation3 + $0xb8] sm:$0xff]
    %v155 = vld [vmem:[#allocation3 + $0xc0] sm:$0xff]
    %v156 = vld [vmem:[#allocation3 + $0xc8] sm:$0xff]
    %v157 = vld [vmem:[#allocation3 + $0xd0] sm:$0xff]
    %v158 = vld [vmem:[#allocation3 + $0xd8] sm:$0xff]
    %v159 = vld [vmem:[#allocation3 + $0xe0] sm:$0xff]
    %v160 = vld [vmem:[#allocation3 + $0xe8] sm:$0xff]
    %v161 = vld [vmem:[#allocation3 + $0xf0] sm:$0xff]
    %v162 = vld [vmem:[#allocation3 + $0xf8] sm:$0xff]
    %v163 = vld [vmem:[%s4] sm:$0x1]
    %v165 = vlaneseq
    %v166 = vshrl.u32 %v165, 7
    %v167 = vsub.s32 0, %v166
    %v168 = vrot.slane %v163, %v167
    %170 = vmatprep.subr.mxu0 0.0
    %171 = vmatpush1.msra.mxu0 %v131
    %172 = vmatprep.subr.mxu0 0.0
    %173 = vmatpush1.msra.mxu0 %v132
    %174 = vmatprep.subr.mxu0 0.0
    %175 = vmatpush1.msra.mxu0 %v133
    %176 = vmatprep.subr.mxu0 0.0
    %177 = vmatpush1.msra.mxu0 %v134
    %178 = vmatprep.subr.mxu0 0.0
    %179 = vmatpush1.msra.mxu0 %v135
    %180 = vmatprep.subr.mxu0 0.0
    %181 = vmatpush1.msra.mxu0 %v136
    %182 = vmatprep.subr.mxu0 0.0
    %183 = vmatpush1.msra.mxu0 %v137
    %184 = vmatprep.subr.mxu0 0.0
    %185 = vmatpush1.msra.mxu0 %v138
    %186 = vmatprep.subr.mxu0 0.0
    %187 = vmatpush1.msra.mxu0 %v139
    %188 = vmatprep.subr.mxu0 0.0
    %189 = vmatpush1.msra.mxu0 %v140
    %190 = vmatprep.subr.mxu0 0.0
    %191 = vmatpush1.msra.mxu0 %v141
    %192 = vmatprep.subr.mxu0 0.0
    %193 = vmatpush1.msra.mxu0 %v142
    %194 = vmatprep.subr.mxu0 0.0
    %195 = vmatpush1.msra.mxu0 %v143
    %196 = vmatprep.subr.mxu0 0.0
    %197 = vmatpush1.msra.mxu0 %v144
    %198 = vmatprep.subr.mxu0 0.0
    %199 = vmatpush1.msra.mxu0 %v145
    %200 = vmatprep.subr.mxu0 0.0
    %201 = vmatpush1.msra.mxu0 %v146
    %202 = vmatprep.subr.mxu0 0.0
    %203 = vmatpush1.msra.mxu0 %v147
    %204 = vmatprep.subr.mxu0 0.0
    %205 = vmatpush1.msra.mxu0 %v148
    %206 = vmatprep.subr.mxu0 0.0
    %207 = vmatpush1.msra.mxu0 %v149
    %208 = vmatprep.subr.mxu0 0.0
    %209 = vmatpush1.msra.mxu0 %v150
    %210 = vmatprep.subr.mxu0 0.0
    %211 = vmatpush1.msra.mxu0 %v151
    %212 = vmatprep.subr.mxu0 0.0
    %213 = vmatpush1.msra.mxu0 %v152
    %214 = vmatprep.subr.mxu0 0.0
    %215 = vmatpush1.msra.mxu0 %v153
    %216 = vmatprep.subr.mxu0 0.0
    %217 = vmatpush1.msra.mxu0 %v154
    %218 = vmatprep.subr.mxu0 0.0
    %219 = vmatpush1.msra.mxu0 %v155
    %220 = vmatprep.subr.mxu0 0.0
    %221 = vmatpush1.msra.mxu0 %v156
    %222 = vmatprep.subr.mxu0 0.0
    %223 = vmatpush1.msra.mxu0 %v157
    %224 = vmatprep.subr.mxu0 0.0
    %225 = vmatpush1.msra.mxu0 %v158
    %226 = vmatprep.subr.mxu0 0.0
    %227 = vmatpush1.msra.mxu0 %v159
    %228 = vmatprep.subr.mxu0 0.0
    %229 = vmatpush1.msra.mxu0 %v160
    %230 = vmatprep.subr.mxu0 0.0
    %231 = vmatpush1.msra.mxu0 %v161
    %232 = vmatprep.subr.mxu0 0.0
    %233 = vmatpush1.msra.mxu0 %v162
    %234 = vmatprep.mubr.f32.mxu0 %v51
    %235 = vmatmul.mubr.f32.gmra.mrb[0].mxu0 %v50
    %v236 = vpop.f32.mrb[0].mxu0
    %v237 = vadd.f32 %v168, %v236
    %v238 = vpop.f32.mrb[0].mxu0
    %239 = vdwg.mxu0
    %v240 = vmax.f32 %v237, 0.0
    %v241 = vld [vmem:[%s5] sm:$0xff]
    %v242 = vld [vmem:[%s5 + $0x8] sm:$0xff]
    %v243 = vld [vmem:[%s5 + $0x10] sm:$0xff]
    %v244 = vld [vmem:[%s5 + $0x18] sm:$0xff]
    %v245 = vld [vmem:[%s5 + $0x20] sm:$0xff]
    %v246 = vld [vmem:[%s5 + $0x28] sm:$0xff]
    %v247 = vld [vmem:[%s5 + $0x30] sm:$0xff]
    %v248 = vld [vmem:[%s5 + $0x38] sm:$0xff]
    %v249 = vld [vmem:[%s5 + $0x40] sm:$0xff]
    %v250 = vld [vmem:[%s5 + $0x48] sm:$0xff]
    %v251 = vld [vmem:[%s5 + $0x50] sm:$0xff]
    %v252 = vld [vmem:[%s5 + $0x58] sm:$0xff]
    %v253 = vld [vmem:[%s5 + $0x60] sm:$0xff]
    %v254 = vld [vmem:[%s5 + $0x68] sm:$0xff]
    %v255 = vld [vmem:[%s5 + $0x70] sm:$0xff]
    %v256 = vld [vmem:[%s5 + $0x78] sm:$0xff]
    %v257 = vld [vmem:[%s6] sm:$0x1]
    %v259 = vlaneseq
    %v260 = vshrl.u32 %v259, 7
    %v261 = vsub.s32 0, %v260
    %v262 = vrot.slane %v257, %v261
    %264 = vmatprep.subr.mxu0 0.0
    %265 = vmatpush1.msra.mxu0 %v241
    %266 = vmatprep.subr.mxu0 0.0
    %267 = vmatpush1.msra.mxu0 %v242
    %268 = vmatprep.subr.mxu0 0.0
    %269 = vmatpush1.msra.mxu0 %v243
    %270 = vmatprep.subr.mxu0 0.0
    %271 = vmatpush1.msra.mxu0 %v244
    %272 = vmatprep.subr.mxu0 0.0
    %273 = vmatpush1.msra.mxu0 %v245
    %274 = vmatprep.subr.mxu0 0.0
    %275 = vmatpush1.msra.mxu0 %v246
    %276 = vmatprep.subr.mxu0 0.0
    %277 = vmatpush1.msra.mxu0 %v247
    %278 = vmatprep.subr.mxu0 0.0
    %279 = vmatpush1.msra.mxu0 %v248
    %280 = vmatprep.subr.mxu0 0.0
    %281 = vmatpush1.msra.mxu0 %v249
    %282 = vmatprep.subr.mxu0 0.0
    %283 = vmatpush1.msra.mxu0 %v250
    %284 = vmatprep.subr.mxu0 0.0
    %285 = vmatpush1.msra.mxu0 %v251
    %286 = vmatprep.subr.mxu0 0.0
    %287 = vmatpush1.msra.mxu0 %v252
    %288 = vmatprep.subr.mxu0 0.0
    %289 = vmatpush1.msra.mxu0 %v253
    %290 = vmatprep.subr.mxu0 0.0
    %291 = vmatpush1.msra.mxu0 %v254
    %292 = vmatprep.subr.mxu0 0.0
    %293 = vmatpush1.msra.mxu0 %v255
    %294 = vmatprep.subr.mxu0 0.0
    %295 = vmatpush1.msra.mxu0 %v256
    %296 = vmatprep.subr.mxu0 0.0
    %297 = vmatpush1.msra.mxu0 0.0
    %298 = vmatprep.subr.mxu0 0.0
    %299 = vmatpush1.msra.mxu0 0.0
    %300 = vmatprep.subr.mxu0 0.0
    %301 = vmatpush1.msra.mxu0 0.0
    %302 = vmatprep.subr.mxu0 0.0
    %303 = vmatpush1.msra.mxu0 0.0
    %304 = vmatprep.subr.mxu0 0.0
    %305 = vmatpush1.msra.mxu0 0.0
    %306 = vmatprep.subr.mxu0 0.0
    %307 = vmatpush1.msra.mxu0 0.0
    %308 = vmatprep.subr.mxu0 0.0
    %309 = vmatpush1.msra.mxu0 0.0
    %310 = vmatprep.subr.mxu0 0.0
    %311 = vmatpush1.msra.mxu0 0.0
    %312 = vmatprep.subr.mxu0 0.0
    %313 = vmatpush1.msra.mxu0 0.0
    %314 = vmatprep.subr.mxu0 0.0
    %315 = vmatpush1.msra.mxu0 0.0
    %316 = vmatprep.subr.mxu0 0.0
    %317 = vmatpush1.msra.mxu0 0.0
    %318 = vmatprep.subr.mxu0 0.0
    %319 = vmatpush1.msra.mxu0 0.0
    %320 = vmatprep.subr.mxu0 0.0
    %321 = vmatpush1.msra.mxu0 0.0
    %322 = vmatprep.subr.mxu0 0.0
    %323 = vmatpush1.msra.mxu0 0.0
    %324 = vmatprep.subr.mxu0 0.0
    %325 = vmatpush1.msra.mxu0 0.0
    %326 = vmatprep.subr.mxu0 0.0
    %327 = vmatpush1.msra.mxu0 0.0
    %328 = vmatprep.mubr.f32.mxu0 0.0
    %329 = vmatmul.mubr.f32.gmra.mrb[0].mxu0 %v240
    %v330 = vpop.f32.mrb[0].mxu0
    %v331 = vadd.f32 %v262, %v330
    %v332 = vpop.f32.mrb[0].mxu0
    %333 = vdwg.mxu0
    %v334 = vmax.f32 %v331, 0.0
    %v335 = vld [vmem:[%s7] sm:$0x3]
    %v337 = vlaneseq
    %v338 = vshrl.u32 %v337, 7
    %v339 = vsub.s32 0, %v338
    %v340 = vrot.slane %v335, %v339
    %v341 = vlaneseq
    %v342 = vshrl.u32 %v341, 7
    %v343 = vsub.s32 1, %v342
    %v344 = vrot.slane %v335, %v343
    %v347 = vmul.f32 %v129, %v340
    %v348 = vmul.f32 %v130, %v344
    %v349 = vadd.f32 %v347, %v348
    %350 = vadd.xlane.f32.xlu0 %v349
    %v351 = vpop.xlane.xlu0 %350
    %v352 = vld [vmem:[%s8] sm:$0x1]
    %v354 = vlaneseq
    %v355 = vshrl.u32 %v354, 7
    %v356 = vsub.s32 0, %v355
    %v357 = vrot.slane %v352, %v356
    %v359 = vmul.f32 %v334, %v357
    %vm360 = vcmask 523264
    %v361 = vsel %vm360, %v359, 0.0
    %362 = vadd.xlane.f32.xlu0 %v361
    %v363 = vpop.xlane.xlu0 %362
    %v364 = vadd.f32 %v351, %v363
    %s365 = sld [smem:[#allocation2]]
    %v366 = vstv %s365
    %v367 = vadd.f32 %v364, %v366
    %v368 = vxor.u32 %v367, 2147483648
    %v369 = vmul.f32 %v368, 1.442695
    %v370 = vpow.pop %v369
    %v371 = vadd.f32 %v370, 1.0
    %v372 = vrcp.pop %v371
    %v373 = vmul.f32 1.0, %v372
    %vm374 = vcmask 7168
    %375 = vst.msk [vmem:[%s10] sm:$0xff] %vm374, %v373
    // Predicated region
    $region46: #{tpu_custom_call.1} parent=1 // pred_check
      _
    $region47: #{tpu_custom_call.1} parent=1 // pred_check_branch
      %377 = sbr.rel (0) target = $region49
    $region48: #{tpu_custom_call.1} parent=1 // pred_region
      _
    $region49: #{tpu_custom_call.1} parent=1 // pred_fallthru
      _
    // Predicated region
    $region50: #{tpu_custom_call.1} parent=1 // pred_check
      _
    $region51: #{tpu_custom_call.1} parent=1 // pred_check_branch
      %379 = sbr.rel (0) target = $region53
    $region52: #{tpu_custom_call.1} parent=1 // pred_region
      _
    $region53: #{tpu_custom_call.1} parent=1 // pred_fallthru
      _
    %380 = vsyncpa [#allocation4], 1

</llo_original>
